<compile_context>
chip_gen: v7x
topology: tpu7x:2x2x1
jax: 0.10.0
libtpu: 0.0.40
codegen_flags: <defaults>
</compile_context>

<pallas_src>
import math

import jax
import jax.numpy as jnp
from jax import lax
from jax.experimental import pallas as pl
from jax.experimental.pallas import tpu as pltpu

LANES = 128
SUBLANES = 8
_INNER_ROWS = 512                # rows per in-kernel accumulation chunk
_DEFAULT_TILE_BYTES = 4 << 20    # HBM bytes per input per grid step


def _round_up(a, b):
    return ((a + b - 1) // b) * b


def _make_psnr_kernel(*, n_blocks, n_per_core, block_rows, chunk_rows,
                      rows_full, rem_lanes, has_tail, has_phantom):
    """Kernel body closed over static tiling / masking parameters."""
    groups = chunk_rows // SUBLANES
    n_chunks = block_rows // chunk_rows

    def kernel(x_ref, y_ref, sse_ref, max_ref):
        p = pl.program_id(0)          # core-parallel axis
        i = pl.program_id(1)          # streaming (arbitrary) axis
        gb = p * n_per_core + i       # global row-block index

        @pl.when(i == 0)
        def _():
            sse_ref[...] = jnp.zeros_like(sse_ref)
            max_ref[...] = jnp.full_like(max_ref, -jnp.inf)

        def accumulate(masked):
            # Chunked accumulation: keeps f32 temporaries at O(chunk) VMEM so
            # the large double-buffered input tiles fit the VMEM budget.
            def body(c, carry):
                r0 = pl.multiple_of(c * chunk_rows, chunk_rows)
                xs = x_ref[pl.ds(r0, chunk_rows), :].astype(jnp.float32)
                ys = y_ref[pl.ds(r0, chunk_rows), :].astype(jnp.float32)
                d = xs - ys
                d2 = d * d
                xm = xs
                if masked:
                    row = lax.broadcasted_iota(
                        jnp.int32, (chunk_rows, LANES), 0)
                    grow = gb * block_rows + c * chunk_rows + row
                    valid = grow < rows_full
                    if rem_lanes:
                        lane = lax.broadcasted_iota(
                            jnp.int32, (chunk_rows, LANES), 1)
                        valid = valid | ((grow == rows_full) &
                                         (lane < rem_lanes))
                    d2 = jnp.where(valid, d2, 0.0)
                    xm = jnp.where(valid, xs, -jnp.inf)
                sse_ref[...] += jnp.sum(
                    d2.reshape(groups, SUBLANES, LANES), axis=0)
                max_ref[...] = jnp.maximum(
                    max_ref[...],
                    jnp.max(xm.reshape(groups, SUBLANES, LANES), axis=0))
                return carry

            lax.fori_loop(0, n_chunks, body, 0, unroll=True)

        if has_tail:
            # Only the globally-last real block pays for the mask; phantom
            # blocks (gb >= n_blocks, from the 2-core split) match neither.
            @pl.when(gb == n_blocks - 1)
            def _():
                accumulate(True)

            @pl.when(gb < n_blocks - 1)
            def _():
                accumulate(False)
        elif has_phantom:
            @pl.when(gb < n_blocks)
            def _():
                accumulate(False)
        else:
            accumulate(False)

    return kernel


def psnr_pallas(img1, img2, tile_bytes=_DEFAULT_TILE_BYTES):
    """PSNR of two images via a single-pass Pallas TPU streaming reduction."""
    assert img1.shape == img2.shape
    n_valid = math.prod(img1.shape)
    itemsize = jnp.dtype(img1.dtype).itemsize
    row_bytes = LANES * itemsize
    mult = max(SUBLANES, 32 // itemsize)   # sublane-packing multiple per dtype

    # Flatten in native dtype (no wrapper-side f32 cast, no full-size pad).
    x = jnp.reshape(img1, (-1,))
    y = jnp.reshape(img2, (-1,))

    rows_needed = pl.cdiv(n_valid, LANES)
    if (n_valid % LANES != 0) or (rows_needed < mult):
        # TODO(synk): rare fallback -- full-array copy; only hit when the flat
        # size isn't a multiple of 128 lanes (or the array is tiny).
        M = max(_round_up(rows_needed, mult), mult)
        pad = M * LANES - n_valid
        x = jnp.pad(x, (0, pad))
        y = jnp.pad(y, (0, pad))
    else:
        M = rows_needed

    x2 = x.reshape(M, LANES)
    y2 = y.reshape(M, LANES)

    # --- Tile size from a byte budget (doubles rows for bf16, etc.) ---------
    budget_rows = max(mult, tile_bytes // row_bytes)
    if budget_rows >= _INNER_ROWS:
        budget_rows = (budget_rows // _INNER_ROWS) * _INNER_ROWS
    else:
        budget_rows = max(mult, (budget_rows // mult) * mult)

    if M >= budget_rows:
        br = budget_rows
        chunk_rows = min(_INNER_ROWS, br)
    elif M >= _INNER_ROWS:
        br = (M // _INNER_ROWS) * _INNER_ROWS
        chunk_rows = _INNER_ROWS
    else:
        br = (M // mult) * mult
        chunk_rows = br

    n_blocks = pl.cdiv(M, br)
    ncores = 2 if n_blocks >= 2 else 1     # split streaming across 2 TCs (v7x)
    n_per_core = pl.cdiv(n_blocks, ncores)
    has_phantom = ncores * n_per_core > n_blocks
    has_tail = (n_blocks * br * LANES) != n_valid
    rows_full = n_valid // LANES
    rem_lanes = n_valid % LANES

    if has_phantom:
        def in_map(p, i):
            return (jnp.minimum(p * n_per_core + i, n_blocks - 1), 0)
    else:
        def in_map(p, i):
            return (p * n_per_core + i, 0)

    # VMEM budget: 2 inputs x 2 pipeline buffers x tile + chunked f32 temps.
    tile_in_bytes = br * row_bytes
    chunk_f32_bytes = chunk_rows * LANES * 4
    vmem_limit = 4 * tile_in_bytes + 8 * chunk_f32_bytes + (4 << 20)
    vmem_limit = int(min(max(vmem_limit, 16 << 20), 48 << 20))

    sse_p, max_p = pl.pallas_call(
        _make_psnr_kernel(
            n_blocks=n_blocks, n_per_core=n_per_core, block_rows=br,
            chunk_rows=chunk_rows, rows_full=rows_full, rem_lanes=rem_lanes,
            has_tail=has_tail, has_phantom=has_phantom),
        out_shape=(
            jax.ShapeDtypeStruct((ncores, SUBLANES, LANES), jnp.float32),
            jax.ShapeDtypeStruct((ncores, SUBLANES, LANES), jnp.float32),
        ),
        grid_spec=pltpu.PrefetchScalarGridSpec(
            num_scalar_prefetch=0,
            grid=(ncores, n_per_core),
            in_specs=[
                pl.BlockSpec((br, LANES), in_map),
                pl.BlockSpec((br, LANES), in_map),
            ],
            out_specs=[
                pl.BlockSpec((1, SUBLANES, LANES), lambda p, i: (p, 0, 0)),
                pl.BlockSpec((1, SUBLANES, LANES), lambda p, i: (p, 0, 0)),
            ],
        ),
        compiler_params=pltpu.CompilerParams(
            dimension_semantics=("parallel", "arbitrary"),
            vmem_limit_bytes=vmem_limit,
        ),
    )(x2, y2)

    # Tiny cross-core + cross-lane combine and the scalar math in the wrapper.
    sse = jnp.sum(sse_p)
    maxv = jnp.max(max_p)
    mse = sse / jnp.float32(n_valid)
    rmse = jnp.sqrt(mse)
    return 20.0 * jnp.log10(maxv / rmse)


def psnr_ref(img1, img2):
    """Pure-JAX reference mirroring the PyTorch module."""
    a = img1.astype(jnp.float32)
    b = img2.astype(jnp.float32)
    mse = jnp.mean((a - b) ** 2)
    rmse = jnp.sqrt(mse)
    maxv = jnp.max(a)
    return 20.0 * jnp.log10(maxv / rmse)


def _check(shape, key):
    k1, k2 = jax.random.split(key)
    img1 = jax.random.uniform(k1, shape, dtype=jnp.float32)
    img2 = img1 + 0.05 * jax.random.normal(k2, shape, dtype=jnp.float32)
    out = jax.block_until_ready(psnr_pallas(img1, img2))
    ref = psnr_ref(img1, img2)
    assert jnp.allclose(out, ref, rtol=1e-4, atol=1e-4), (shape, out, ref)
    return out


if __name__ == "__main__":
    key = jax.random.PRNGKey(0)
    k0, k1, k2 = jax.random.split(key, 3)

    # Primary small NCHW case: batch=2, channels=4, spatial=16.
    _check((2, 4, 16, 16), k0)
    # Irregular size: exercises the non-multiple-of-128 fallback + tail mask.
    _check((2, 3, 37, 53), k1)
    # Multi-block case: exercises the 2-core split, partial last block mask
    # and the phantom-block skip path.
    _check((2, 4, 512, 520), k2)

    print("KERNEL_OK")
</pallas_src>

<mosaic_0001>
module attributes {stable_mosaic.version = 11 : i64} {
  func.func @kernel(%arg0: i32, %arg1: i32, %arg2: memref<16x128xf32, #tpu.memory_space<vmem>>, %arg3: memref<16x128xf32, #tpu.memory_space<vmem>>, %arg4: memref<1x8x128xf32, #tpu.memory_space<vmem>>, %arg5: memref<1x8x128xf32, #tpu.memory_space<vmem>>) attributes {dimension_semantics = [#tpu.dimension_semantics<parallel>, #tpu.dimension_semantics<arbitrary>], iteration_bounds = array<i64: 1, 1>, scalar_prefetch = 0 : i64, scratch_operands = 0 : i64, tpu.core_type = #tpu.core_type<tc>, window_params = [{transform_indices = @transform_0, window_bounds = array<i64: 16, 128>}, {transform_indices = @transform_1, window_bounds = array<i64: 16, 128>}, {transform_indices = @transform_2, window_bounds = array<i64: 1, 8, 128>}, {transform_indices = @transform_3, window_bounds = array<i64: 1, 8, 128>}]} {
    %c0_i32 = arith.constant 0 : i32
    %0 = arith.cmpi eq, %arg1, %c0_i32 : i32
    %1 = arith.extui %0 : i1 to i32
    %c0_i32_0 = arith.constant 0 : i32
    %2 = arith.cmpi ne, %1, %c0_i32_0 : i32
    scf.if %2 {
      %cst_16 = arith.constant 0.000000e+00 : f32
      %23 = vector.broadcast %cst_16 : f32 to vector<1x8x128xf32>
      %c0_17 = arith.constant 0 : index
      %c0_18 = arith.constant 0 : index
      %c0_19 = arith.constant 0 : index
      %24 = vector.load %arg4[%c0_17, %c0_18, %c0_19] : memref<1x8x128xf32, #tpu.memory_space<vmem>>, vector<1x8x128xf32>
      tpu.vector_store %arg4[%c0_17, %c0_18, %c0_19], %23 {strides = array<i32>} : memref<1x8x128xf32, #tpu.memory_space<vmem>>, vector<1x8x128xf32>,
      %cst_20 = arith.constant 0xFF800000 : f32
      %25 = vector.broadcast %cst_20 : f32 to vector<1x8x128xf32>
      %c0_21 = arith.constant 0 : index
      %c0_22 = arith.constant 0 : index
      %c0_23 = arith.constant 0 : index
      %26 = vector.load %arg5[%c0_21, %c0_22, %c0_23] : memref<1x8x128xf32, #tpu.memory_space<vmem>>, vector<1x8x128xf32>
      tpu.vector_store %arg5[%c0_21, %c0_22, %c0_23], %25 {strides = array<i32>} : memref<1x8x128xf32, #tpu.memory_space<vmem>>, vector<1x8x128xf32>,
    } else {
    }
    %c0_i32_1 = arith.constant 0 : i32
    %c16_i32 = arith.constant 16 : i32
    %3 = arith.muli %c0_i32_1, %c16_i32 : i32
    %4 = tpu.assume_multiple %3, 16 : i32
    %5 = arith.index_cast %4 : i32 to index
    %c0 = arith.constant 0 : index
    %6 = vector.load %arg2[%5, %c0] : memref<16x128xf32, #tpu.memory_space<vmem>>, vector<16x128xf32>
    %7 = arith.index_cast %4 : i32 to index
    %c0_2 = arith.constant 0 : index
    %8 = vector.load %arg3[%7, %c0_2] : memref<16x128xf32, #tpu.memory_space<vmem>>, vector<16x128xf32>
    %9 = arith.subf %6, %8 : vector<16x128xf32>
    %10 = arith.mulf %9, %9 : vector<16x128xf32>
    %c0_3 = arith.constant 0 : index
    %c0_4 = arith.constant 0 : index
    %c0_5 = arith.constant 0 : index
    %11 = vector.load %arg4[%c0_3, %c0_4, %c0_5] : memref<1x8x128xf32, #tpu.memory_space<vmem>>, vector<1x8x128xf32>
    %12 = vector.shape_cast %10 : vector<16x128xf32> to vector<2x8x128xf32>
    %cst = arith.constant dense<0.000000e+00> : vector<8x128xf32>
    %13 = vector.multi_reduction <add>, %12, %cst [0] : vector<2x8x128xf32> to vector<8x128xf32>
    %14 = vector.shape_cast %13 : vector<8x128xf32> to vector<1x8x128xf32>
    %15 = arith.addf %11, %14 : vector<1x8x128xf32>
    %c0_6 = arith.constant 0 : index
    %c0_7 = arith.constant 0 : index
    %c0_8 = arith.constant 0 : index
    %16 = vector.load %arg4[%c0_6, %c0_7, %c0_8] : memref<1x8x128xf32, #tpu.memory_space<vmem>>, vector<1x8x128xf32>
    tpu.vector_store %arg4[%c0_6, %c0_7, %c0_8], %15 {strides = array<i32>} : memref<1x8x128xf32, #tpu.memory_space<vmem>>, vector<1x8x128xf32>,
    %c0_9 = arith.constant 0 : index
    %c0_10 = arith.constant 0 : index
    %c0_11 = arith.constant 0 : index
    %17 = vector.load %arg5[%c0_9, %c0_10, %c0_11] : memref<1x8x128xf32, #tpu.memory_space<vmem>>, vector<1x8x128xf32>
    %18 = vector.shape_cast %6 : vector<16x128xf32> to vector<2x8x128xf32>
    %cst_12 = arith.constant dense<0xFF800000> : vector<8x128xf32>
    %19 = vector.multi_reduction <maximumf>, %18, %cst_12 [0] : vector<2x8x128xf32> to vector<8x128xf32>
    %20 = vector.shape_cast %19 : vector<8x128xf32> to vector<1x8x128xf32>
    %21 = arith.maximumf %17, %20 : vector<1x8x128xf32>
    %c0_13 = arith.constant 0 : index
    %c0_14 = arith.constant 0 : index
    %c0_15 = arith.constant 0 : index
    %22 = vector.load %arg5[%c0_13, %c0_14, %c0_15] : memref<1x8x128xf32, #tpu.memory_space<vmem>>, vector<1x8x128xf32>
    tpu.vector_store %arg5[%c0_13, %c0_14, %c0_15], %21 {strides = array<i32>} : memref<1x8x128xf32, #tpu.memory_space<vmem>>, vector<1x8x128xf32>,
    %c1_i32 = arith.constant 1 : i32
    return
  }
  func.func @transform_0(%arg0: i32, %arg1: i32) -> (i32, i32) {
    %c1_i32 = arith.constant 1 : i32
    %0 = arith.muli %arg0, %c1_i32 : i32
    %1 = arith.addi %0, %arg1 : i32
    %c0_i32 = arith.constant 0 : i32
    %c0_i32_0 = arith.constant 0 : i32
    return %1, %c0_i32 : i32, i32
  }
  func.func @transform_1(%arg0: i32, %arg1: i32) -> (i32, i32) {
    %c1_i32 = arith.constant 1 : i32
    %0 = arith.muli %arg0, %c1_i32 : i32
    %1 = arith.addi %0, %arg1 : i32
    %c0_i32 = arith.constant 0 : i32
    %c0_i32_0 = arith.constant 0 : i32
    return %1, %c0_i32 : i32, i32
  }
  func.func @transform_2(%arg0: i32, %arg1: i32) -> (i32, i32, i32) {
    %c0_i32 = arith.constant 0 : i32
    %c0_i32_0 = arith.constant 0 : i32
    %c0_i32_1 = arith.constant 0 : i32
    return %arg0, %c0_i32, %c0_i32_0 : i32, i32, i32
  }
  func.func @transform_3(%arg0: i32, %arg1: i32) -> (i32, i32, i32) {
    %c0_i32 = arith.constant 0 : i32
    %c0_i32_0 = arith.constant 0 : i32
    %c0_i32_1 = arith.constant 0 : i32
    return %arg0, %c0_i32, %c0_i32_0 : i32, i32, i32
  }
}

</mosaic_0001>

<llo_original>
// kernel: tpu_custom_call.1
$region0: #{tpu_custom_call.1}
  #allocation0 [shape = 'u32[]', space=smem, size = 0x4, offset = 0x4, fixed_abs, tag = 'smem constant byte address 0x4 - core index']
  #allocation1 [shape = 'u32[144,128]{1,0:T(1,128)}', space=vmem, size = 0x12000, scoped, tag = 'internal scratch']
  %s0 = inlined_call_operand.hbm [shape: f32[16,128], index: 0, kind: input, shape index: {}]
  %s1 = inlined_call_operand.hbm [shape: f32[16,128], index: 1, kind: input, shape index: {}]
  %s2 = inlined_call_operand.hbm [shape: f32[1,8,128], index: 2, kind: output, shape index: {0}]
  %s3 = inlined_call_operand.hbm [shape: f32[1,8,128], index: 3, kind: output, shape index: {1}]
  %4 = xla_tuple %s2, %s3
  %s5 = sld [smem:[#allocation0]]
  $region38: #{tpu_custom_call.1} parent=0
    _
  %s7 = ssub.s32 1, %s5
  %s8 = scalar_select 0, %s7, %s5
  $region1: #{tpu_custom_call.1} parent=0
    #allocation2 [shape = 'u8[8192]{0}', space=vmem, size = 0x2000, scoped, tag = 'input window, operand 0, single buffered']
    #allocation3 [shape = 's32[1]{0}', space=sflag, size = 0x4, scoped, tag = 'scoped memory for tpu_custom_call.1']
    #allocation4 [shape = 's32[1]{0}', space=sflag, size = 0x4, scoped, tag = 'scoped memory for tpu_custom_call.1']
    #allocation5 [shape = 'u8[8192]{0}', space=vmem, size = 0x2000, scoped, tag = 'input window, operand 1, single buffered']
    #allocation6 [shape = 's32[1]{0}', space=sflag, size = 0x4, scoped, tag = 'scoped memory for tpu_custom_call.1']
    #allocation7 [shape = 'u8[4096]{0}', space=vmem, size = 0x1000, scoped, tag = 'output window, operand 0, single buffered']
    #allocation8 [shape = 'u8[4096]{0}', space=vmem, size = 0x1000, scoped, tag = 'output window, operand 1, single buffered']
    #allocation9 [shape = 's32[1]{0}', space=sflag, size = 0x4, scoped, tag = 'scoped memory for tpu_custom_call.1']
    %9 = vsyncpa [#allocation3], 0
    %10 = vsyncpa [#allocation6], 0
    %11 = vsyncpa [#allocation4], 0
    %12 = vsyncpa [#allocation9], 0
    // Predicated region
    $region2: #{tpu_custom_call.1} parent=1 // pred_check
      _
    $region3: #{tpu_custom_call.1} parent=1 // pred_check_branch
      %14 = sbr.rel (0) target = $region5
    $region4: #{tpu_custom_call.1} parent=1 // pred_region
      %s15 = sadd.s32 0, 0
      %s16 = smul.u32 2, %s15
      %s18 = ssub.s32 256, 256
      %19 = vsyncadd [#allocation3], %s18
      %s20 = smul.addr %s16, 128
      %s21 = scalar_lea.hbm %s0, %s20
      %s22 = sshll.u32 [#allocation2], 4
      %s23 = int_to_ptr.vmem [resolvable:$true] %s22
      %28 = dma.hbm_to_vmem [thread:$0]  %s21, 256, %s23, [#allocation3], 128, 128, 8
    $region5: #{tpu_custom_call.1} parent=1 // pred_fallthru
      _
    // Predicated region
    $region6: #{tpu_custom_call.1} parent=1 // pred_check
      _
    $region7: #{tpu_custom_call.1} parent=1 // pred_check_branch
      %30 = sbr.rel (0) target = $region9
    $region8: #{tpu_custom_call.1} parent=1 // pred_region
      %s31 = sadd.s32 0, 0
      %s32 = smul.u32 2, %s31
      %s34 = ssub.s32 256, 256
      %35 = vsyncadd [#allocation6], %s34
      %s36 = smul.addr %s32, 128
      %s37 = scalar_lea.hbm %s1, %s36
      %s38 = sshll.u32 [#allocation5], 4
      %s39 = int_to_ptr.vmem [resolvable:$true] %s38
      %44 = dma.hbm_to_vmem [thread:$0]  %s37, 256, %s39, [#allocation6], 128, 128, 8
    $region9: #{tpu_custom_call.1} parent=1 // pred_fallthru
      _
    // Predicated region
    $region10: #{tpu_custom_call.1} parent=1 // pred_check
      _
    $region11: #{tpu_custom_call.1} parent=1 // pred_check_branch
      %46 = sbr.rel (0) target = $region13
    $region12: #{tpu_custom_call.1} parent=1 // pred_region
      %47 = dma.done [#allocation3], 256
    $region13: #{tpu_custom_call.1} parent=1 // pred_fallthru
      _
    // Predicated region
    $region14: #{tpu_custom_call.1} parent=1 // pred_check
      _
    $region15: #{tpu_custom_call.1} parent=1 // pred_check_branch
      %49 = sbr.rel (0) target = $region17
    $region16: #{tpu_custom_call.1} parent=1 // pred_region
      %50 = dma.done [#allocation6], 256
    $region17: #{tpu_custom_call.1} parent=1 // pred_fallthru
      _
    %s51 = sadd.s32 0, 0
    %s52 = smul.u32 2, %s51
    %s53 = sadd.s32 0, 0
    %s54 = smul.u32 2, %s53
    %p55 = scmp.eq.s32.totalorder 0, 0
    // Predicated region
    $region18: #{tpu_custom_call.1} parent=1 // pred_check
      %p56 = pneg %p55
    $region19: #{tpu_custom_call.1} parent=1 // pred_check_branch
      %58 = sbr.rel (%p56) target = $region21
    $region20: #{tpu_custom_call.1} parent=1 // pred_region
      %59 = vst [vmem:[#allocation7] sm:$0xff] 0.0
      %60 = vst [vmem:[#allocation8] sm:$0xff] -inf
    $region21: #{tpu_custom_call.1} parent=1 // pred_fallthru
      _
    %v61 = vld [vmem:[#allocation2] sm:$0xff]
    %v62 = vld [vmem:[#allocation2 + $0x8] sm:$0xff]
    %v63 = vld [vmem:[#allocation5] sm:$0xff]
    %v64 = vld [vmem:[#allocation5 + $0x8] sm:$0xff]
    %v65 = vsub.f32 %v61, %v63
    %v66 = vsub.f32 %v62, %v64
    %v67 = vmul.f32 %v65, %v65
    %v68 = vmul.f32 %v66, %v66
    %v69 = vld [vmem:[#allocation7] sm:$0xff]
    %v70 = vadd.f32 %v67, %v68
    %v71 = vadd.f32 %v69, %v70
    %72 = vst [vmem:[#allocation7] sm:$0xff] %v71
    %v73 = vld [vmem:[#allocation8] sm:$0xff]
    %v74 = vmax.f32 %v61, %v62
    %v75 = vmax.f32 %v73, %v74
    %76 = vst [vmem:[#allocation8] sm:$0xff] %v75
    // Predicated region
    $region22: #{tpu_custom_call.1} parent=1 // pred_check
      _
    $region23: #{tpu_custom_call.1} parent=1 // pred_check_branch
      %78 = sbr.rel (0) target = $region25
    $region24: #{tpu_custom_call.1} parent=1 // pred_region
      %s80 = ssub.s32 128, 128
      %81 = vsyncadd [#allocation4], %s80
      %s83 = sshll.u32 [#allocation7], 4
      %s84 = int_to_ptr.vmem [resolvable:$true] %s83
      %86 = dma.vmem_to_hbm [thread:$0]  %s84, 128, %s2, [#allocation4]
    $region25: #{tpu_custom_call.1} parent=1 // pred_fallthru
      _
    // Predicated region
    $region26: #{tpu_custom_call.1} parent=1 // pred_check
      _
    $region27: #{tpu_custom_call.1} parent=1 // pred_check_branch
      %88 = sbr.rel (0) target = $region29
    $region28: #{tpu_custom_call.1} parent=1 // pred_region
      %s90 = ssub.s32 128, 128
      %91 = vsyncadd [#allocation9], %s90
      %s93 = sshll.u32 [#allocation8], 4
      %s94 = int_to_ptr.vmem [resolvable:$true] %s93
      %96 = dma.vmem_to_hbm [thread:$0]  %s94, 128, %s3, [#allocation9]
    $region29: #{tpu_custom_call.1} parent=1 // pred_fallthru
      _
    // Predicated region
    $region30: #{tpu_custom_call.1} parent=1 // pred_check
      _
    $region31: #{tpu_custom_call.1} parent=1 // pred_check_branch
      %98 = sbr.rel (0) target = $region33
    $region32: #{tpu_custom_call.1} parent=1 // pred_region
      %99 = dma.done [#allocation4], 128
    $region33: #{tpu_custom_call.1} parent=1 // pred_fallthru
      _
    // Predicated region
    $region34: #{tpu_custom_call.1} parent=1 // pred_check
      _
    $region35: #{tpu_custom_call.1} parent=1 // pred_check_branch
      %101 = sbr.rel (0) target = $region37
    $region36: #{tpu_custom_call.1} parent=1 // pred_region
      %102 = dma.done [#allocation9], 128
    $region37: #{tpu_custom_call.1} parent=1 // pred_fallthru
      _
    %103 = vsyncpa [#allocation3], 1
    %104 = vsyncpa [#allocation6], 1
    %105 = vsyncpa [#allocation4], 1
    %106 = vsyncpa [#allocation9], 1

</llo_original>
